<compile_context>
chip_gen: v7x
topology: tpu7x:2x2x1
jax: 0.10.0
libtpu: 0.0.40
codegen_flags: <defaults>
</compile_context>

<pallas_src>
import jax
import jax.numpy as jnp
from jax import lax
from jax.experimental import pallas as pl
from jax.experimental.pallas import tpu as pltpu

_BN_EPS = 1e-5
_MOMENTS_VIA_MXU_MIN_BATCH = 128   # below this, XLU sublane reduces are fine


def _round_up(x, m):
    return -(-x // m) * m


def _padded_bytes(shape, dtype):
    """VMEM footprint of a 1-D/2-D array after dtype-aware tile padding.

    f32/int32 tiles are (8,128); bf16 (16,128); int8 (32,128).
    """
    dtype = jnp.dtype(dtype)
    sub = 8 * max(1, 4 // dtype.itemsize)
    rows = shape[0] if len(shape) >= 2 else 1
    cols = shape[-1] if len(shape) >= 1 else 1
    return _round_up(max(rows, 1), sub) * _round_up(max(cols, 1), 128) * dtype.itemsize


def _vmem_budget_bytes():
    """~75% of this generation's VMEM capacity (v5e/v6e 128 MiB, v7x 64 MiB)."""
    cap = 64 * 1024 * 1024
    try:
        info = pltpu.get_tpu_info()
        cap = int(getattr(info, "vmem_capacity_bytes", cap) or cap)
    except Exception:
        pass
    return min(int(cap * 3 // 4), 112 * 1024 * 1024)


def _bn_relu(x, gamma, beta, moments_via_mxu):
    """nn.BatchNorm1d (training mode, biased variance, eps=1e-5) + ReLU.

    Two-pass (mean-centred) variance for numerical robustness.  For large
    batches the column sums go through the MXU (ones @ x) instead of two
    cross-sublane XLU reductions per layer; all elementwise work stays f32.
    NOTE: dropping the pre-BN linear bias upstream is only valid for this
    training-mode (batch-statistics) BatchNorm.
    """
    b = x.shape[0]
    inv_n = 1.0 / b
    if moments_via_mxu:
        ones = jnp.ones((1, b), jnp.float32)
        mean = jnp.dot(ones, x, preferred_element_type=jnp.float32) * inv_n
        xc = x - mean
        var = jnp.dot(ones, xc * xc, preferred_element_type=jnp.float32) * inv_n
    else:
        mean = jnp.sum(x, axis=0, keepdims=True) * inv_n
        xc = x - mean
        var = jnp.sum(xc * xc, axis=0, keepdims=True) * inv_n
    scale = gamma * lax.rsqrt(var + _BN_EPS)
    return jnp.maximum(xc * scale + beta, 0.0)


def _make_kernel(nuniques, emb_dims, n_num, fc_dims, moments_via_mxu):
    """Builds the fused forward kernel (network structure fixed at trace time)."""
    n_cat = len(nuniques)
    n_fc = len(fc_dims)
    has_num = n_num > 0

    def kernel(*refs):
        p = 0
        idx_ref = refs[p]; p += 1                      # [B, n_cat] int32 ids
        num_ref = None
        if has_num:
            num_ref = refs[p]; p += 1                  # [B, n_num] f32
        tab_refs = refs[p:p + n_cat]; p += n_cat       # per-feature tables
        fcw_refs = refs[p:p + n_fc]; p += n_fc         # FC weights (bias-free)
        ow_ref = refs[p]; p += 1                       # [1, H_last] output row
        bn_ref = refs[p]; p += 1                       # packed gammas/betas/bias
        out_ref = refs[p]                              # [1, B] lane-dense out

        idx = idx_ref[...]
        bn = bn_ref[...]
        B = idx.shape[0]

        def bn_relu(z, gamma_row, width):
            gamma = bn[gamma_row:gamma_row + 1, :width]
            beta = bn[gamma_row + 1:gamma_row + 2, :width]
            return _bn_relu(z, gamma, beta, moments_via_mxu)

        # ---- per-feature embedding gather (one-hot matmul) + BN + ReLU ----
        # TODO(synk): switch to a scalar-prefetch DMA row gather for huge nu.
        pieces = []
        for c in range(n_cat):
            table = tab_refs[c][...]                   # bf16 in the perf build
            onehot = (lax.broadcasted_iota(jnp.int32, (B, nuniques[c]), 1)
                      == idx[:, c:c + 1]).astype(table.dtype)
            e = jnp.dot(onehot, table, preferred_element_type=jnp.float32)
            pieces.append(bn_relu(e, 2 * c, emb_dims[c]))
        if has_num:
            pieces.append(num_ref[...])

        # One lane-concat -> single K-dense slab feeding the first FC matmul.
        x = pieces[0] if len(pieces) == 1 else jnp.concatenate(pieces, axis=-1)

        # ---- FC layers: one full-width matmul each (biases cancelled by BN) --
        for l in range(n_fc):
            w = fcw_refs[l][...]
            x = jnp.dot(x.astype(w.dtype), w, preferred_element_type=jnp.float32)
            x = bn_relu(x, 2 * (n_cat + l), fc_dims[l])

        # ---- output layer: [1,H] x [B,H]^T -> lane-dense [1, B] ----
        wo = ow_ref[...]
        bo = bn[2 * (n_cat + n_fc):2 * (n_cat + n_fc) + 1, 0:1]
        out = lax.dot_general(wo, x.astype(wo.dtype),
                              dimension_numbers=(((1,), (1,)), ((), ())),
                              preferred_element_type=jnp.float32)
        out_ref[...] = out + bo

    return kernel


def prepare_params(params, cfg, matmul_dtype=jnp.bfloat16):
    """One-time host-side packing; do NOT rebuild this per forward call.

    * embedding tables and matmul weights cast to `matmul_dtype`
      (bf16 default: single-pass MXU on v5e/v6e/v7x, half the weight DMA bytes)
    * all per-channel vectors (BN gammas/betas + output bias) packed into ONE
      f32 slab so the kernel sees one ref / one DMA instead of dozens
    * pre-BN Linear biases dropped (exactly cancelled by training-mode BN);
      only the output bias is kept
    * FC weights stay whole: the kernel concatenates activations and does one
      K-dense matmul per layer.
    """
    emb_dims = [d for _, d in cfg["nuniques_to_dims"]]
    fc_dims = list(cfg["fc_layers_construction"])
    mm = jnp.dtype(matmul_dtype)

    tables = [jnp.asarray(t, mm) for t in params["emb_tables"]]
    fc_w = [jnp.asarray(w, mm) for w in params["fc_w"]]
    out_w_row = jnp.asarray(params["out_w"][:, 0][None, :], mm)   # [1, H_last]

    vec_list = []
    for c in range(len(emb_dims)):
        vec_list += [params["emb_bn_gamma"][c], params["emb_bn_beta"][c]]
    for l in range(len(fc_dims)):
        vec_list += [params["fc_gamma"][l], params["fc_beta"][l]]
    vec_list += [params["out_b"]]
    width = max(int(v.shape[0]) for v in vec_list)
    rows = [jnp.pad(jnp.asarray(v, jnp.float32), (0, width - int(v.shape[0])))[None, :]
            for v in vec_list]
    bn_slab = jnp.concatenate(rows, axis=0)            # [2*(n_cat+n_fc)+1, W]

    return {"tables": tables, "fc_w": fc_w, "out_w_row": out_w_row,
            "bn_slab": bn_slab, "matmul_dtype": mm}


def categorical_dnn_forward(x, packed, cfg):
    nuniques = tuple(nu for nu, _ in cfg["nuniques_to_dims"])
    emb_dims = tuple(d for _, d in cfg["nuniques_to_dims"])
    fc_dims = tuple(cfg["fc_layers_construction"])
    n_cat = len(nuniques)
    B = x.shape[0]
    n_num = x.shape[1] - n_cat
    has_num = n_num > 0
    mm = packed["matmul_dtype"]

    cat = x[:, :n_cat].astype(jnp.int32)     # .long() truncation (ids >= 0)
    args = [cat]
    if has_num:
        args.append(x[:, n_cat:].astype(jnp.float32))
    args += list(packed["tables"]) + list(packed["fc_w"])
    args += [packed["out_w_row"], packed["bn_slab"]]

    # ---- VMEM budgeting: derived per TPU generation (75% of capacity) ----
    budget = _vmem_budget_bytes()
    est = sum(_padded_bytes(a.shape, a.dtype) for a in args)
    est += sum(_padded_bytes((B, nu), mm) for nu in nuniques)        # one-hots
    act_widths = list(emb_dims) + [sum(emb_dims) + n_num] + list(fc_dims) + [B]
    est += 2 * sum(_padded_bytes((B, w), jnp.float32) for w in act_widths)
    if est > budget:
        raise ValueError(
            f"Estimated VMEM footprint {est / 2**20:.1f} MiB exceeds the derived "
            f"budget {budget / 2**20:.0f} MiB. "
            "TODO(synk): batch-grid + two-pass cross-tile BatchNorm variant "
            "needed for configs this large.")

    kernel = _make_kernel(nuniques, emb_dims, n_num, fc_dims,
                          moments_via_mxu=(B >= _MOMENTS_VIA_MXU_MIN_BATCH))
    vmem = pl.BlockSpec(memory_space=pltpu.MemorySpace.VMEM)
    out = pl.pallas_call(
        kernel,
        out_shape=jax.ShapeDtypeStruct((1, B), jnp.float32),   # lane-dense
        in_specs=[vmem] * len(args),
        out_specs=vmem,
        compiler_params=pltpu.CompilerParams(vmem_limit_bytes=budget),
    )(*args)
    return out.reshape(B, 1)


# ---------------- pure-JAX reference (mirrors the PyTorch forward) -----------
def _ref_bn(x, g, b):
    m = x.mean(0, keepdims=True)
    v = ((x - m) ** 2).mean(0, keepdims=True)
    return (x - m) / jnp.sqrt(v + _BN_EPS) * g + b


def reference_forward(x, params, cfg):
    n_cat = len(cfg["nuniques_to_dims"])
    cat = x[:, :n_cat].astype(jnp.int32)
    num = x[:, n_cat:]
    embs = []
    for i, t in enumerate(params["emb_tables"]):
        e = jnp.take(t, cat[:, i], axis=0)
        e = jnp.maximum(_ref_bn(e, params["emb_bn_gamma"][i],
                                params["emb_bn_beta"][i]), 0.0)
        embs.append(e)
    out = jnp.concatenate(embs + [num], axis=1)
    for li in range(len(cfg["fc_layers_construction"])):
        out = out @ params["fc_w"][li] + params["fc_b"][li]
        out = jnp.maximum(_ref_bn(out, params["fc_gamma"][li],
                                  params["fc_beta"][li]), 0.0)
    return out @ params["out_w"] + params["out_b"]


# ---------------------------- parameter init ---------------------------------
def init_params(key, nuniques_to_dims, n_num, fc_dims):
    p = {"emb_tables": [], "emb_bn_gamma": [], "emb_bn_beta": [],
         "fc_w": [], "fc_b": [], "fc_gamma": [], "fc_beta": []}
    for nu, d in nuniques_to_dims:
        key, k1, k2, k3 = jax.random.split(key, 4)
        p["emb_tables"].append(jax.random.normal(k1, (nu, d), jnp.float32))
        p["emb_bn_gamma"].append(jax.random.uniform(k2, (d,), jnp.float32, 0.5, 1.5))
        p["emb_bn_beta"].append(0.1 * jax.random.normal(k3, (d,), jnp.float32))
    n_in = sum(d for _, d in nuniques_to_dims) + n_num
    for n_out in fc_dims:
        key, k1, k2, k3, k4 = jax.random.split(key, 5)
        bound = 1.0 / (n_in ** 0.5)
        p["fc_w"].append(jax.random.uniform(k1, (n_in, n_out), jnp.float32, -bound, bound))
        p["fc_b"].append(jax.random.uniform(k2, (n_out,), jnp.float32, -bound, bound))
        p["fc_gamma"].append(jax.random.uniform(k3, (n_out,), jnp.float32, 0.5, 1.5))
        p["fc_beta"].append(0.1 * jax.random.normal(k4, (n_out,), jnp.float32))
        n_in = n_out
    key, k1, k2 = jax.random.split(key, 3)
    bound = 1.0 / (n_in ** 0.5)
    p["out_w"] = jax.random.uniform(k1, (n_in, 1), jnp.float32, -bound, bound)
    p["out_b"] = jax.random.uniform(k2, (1,), jnp.float32, -bound, bound)
    return p


if __name__ == "__main__":
    def run_case(cfg, B, key, f32_tol, bf16_tol):
        key, kp, kc, kn = jax.random.split(key, 4)
        params = init_params(kp, cfg["nuniques_to_dims"],
                             cfg["num_numerical_features"],
                             cfg["fc_layers_construction"])
        # Input [B, n_cat + n_num]: categorical ids stored as floats (cast to
        # int inside the forward, like .long()), then numerical features.
        cat_cols = []
        for nu, _ in cfg["nuniques_to_dims"]:
            kc, ki = jax.random.split(kc)
            cat_cols.append(jax.random.randint(ki, (B, 1), 0, nu).astype(jnp.float32))
        num_cols = jax.random.normal(kn, (B, cfg["num_numerical_features"]),
                                     jnp.float32)
        x = jnp.concatenate(cat_cols + [num_cols], axis=1)

        ref = reference_forward(x, params, cfg)

        # Exact-ish path: f32 matmul operands.
        packed_f32 = prepare_params(params, cfg, matmul_dtype=jnp.float32)
        out_f32 = jax.block_until_ready(categorical_dnn_forward(x, packed_f32, cfg))
        assert out_f32.shape == (B, 1)
        assert jnp.allclose(out_f32, ref, rtol=f32_tol, atol=f32_tol), (out_f32, ref)

        # Performance path: bf16 gather + bf16 MXU operands, f32 accumulation.
        packed_bf16 = prepare_params(params, cfg, matmul_dtype=jnp.bfloat16)
        out_bf16 = jax.block_until_ready(categorical_dnn_forward(x, packed_bf16, cfg))
        assert out_bf16.shape == (B, 1)
        assert jnp.allclose(out_bf16, ref, rtol=bf16_tol, atol=bf16_tol), (out_bf16, ref)
        return key

    key = jax.random.PRNGKey(0)

    # Small case (same toy as the module example): XLU-reduce BN moments path.
    cfg_small = {
        "nuniques_to_dims": [(10, 3), (7, 4), (20, 5)],   # 3 categorical cols, E=12
        "num_numerical_features": 4,
        "fc_layers_construction": [32, 16],
        "dropout_probability": 0.0,
    }
    key = run_case(cfg_small, B=8, key=key, f32_tol=5e-3, bf16_tol=1e-1)

    # Larger case: exercises the lane-dense [1,B] store and the
    # moments-via-matmul BatchNorm path (B >= 128).
    cfg_large = {
        "nuniques_to_dims": [(50, 8), (30, 8), (100, 16)],
        "num_numerical_features": 8,
        "fc_layers_construction": [64, 32],
        "dropout_probability": 0.0,
    }
    key = run_case(cfg_large, B=256, key=key, f32_tol=5e-2, bf16_tol=1e-1)

    print("KERNEL_OK")
</pallas_src>

<mosaic_0001>
module attributes {stable_mosaic.version = 11 : i64} {
  func.func @kernel(%arg0: memref<8x3xi32, #tpu.memory_space<vmem>>, %arg1: memref<8x4xf32, #tpu.memory_space<vmem>>, %arg2: memref<10x3xf32, #tpu.memory_space<vmem>>, %arg3: memref<7x4xf32, #tpu.memory_space<vmem>>, %arg4: memref<20x5xf32, #tpu.memory_space<vmem>>, %arg5: memref<16x32xf32, #tpu.memory_space<vmem>>, %arg6: memref<32x16xf32, #tpu.memory_space<vmem>>, %arg7: memref<1x16xf32, #tpu.memory_space<vmem>>, %arg8: memref<11x32xf32, #tpu.memory_space<vmem>>, %arg9: memref<1x8xf32, #tpu.memory_space<vmem>>) attributes {dimension_semantics = [], scalar_prefetch = 0 : i64, scratch_operands = 0 : i64, tpu.core_type = #tpu.core_type<tc>} {
    %c0 = arith.constant 0 : index
    %c0_0 = arith.constant 0 : index
    %0 = vector.load %arg0[%c0, %c0_0] : memref<8x3xi32, #tpu.memory_space<vmem>>, vector<8x3xi32>
    %c0_1 = arith.constant 0 : index
    %c0_2 = arith.constant 0 : index
    %1 = vector.load %arg8[%c0_1, %c0_2] : memref<11x32xf32, #tpu.memory_space<vmem>>, vector<11x32xf32>
    %c0_3 = arith.constant 0 : index
    %c0_4 = arith.constant 0 : index
    %2 = vector.load %arg2[%c0_3, %c0_4] : memref<10x3xf32, #tpu.memory_space<vmem>>, vector<10x3xf32>
    %3 = tpu.iota {dimensions = array<i32: 1>} : vector<8x10xi32>
    %4 = vector.extract_strided_slice %0 {offsets = [0, 0], sizes = [8, 1], strides = [1, 1]} : vector<8x3xi32> to vector<8x1xi32>
    %5 = vector.broadcast %4 : vector<8x1xi32> to vector<8x10xi32>
    %6 = arith.cmpi eq, %3, %5 : vector<8x10xi32>
    %7 = arith.extui %6 : vector<8x10xi1> to vector<8x10xi32>
    %8 = arith.sitofp %7 : vector<8x10xi32> to vector<8x10xf32>
    %cst = arith.constant dense<0.000000e+00> : vector<8x3xf32>
    %9 = tpu.matmul %8, %2, %cst {dimension_numbers = #tpu.dot_dimension_numbers<[1], [0], [0], [1], [0, 0, 1, 1], [], []>} : vector<8x10xf32>, vector<10x3xf32>, vector<8x3xf32> -> vector<8x3xf32>
    %10 = vector.extract_strided_slice %1 {offsets = [0, 0], sizes = [1, 3], strides = [1, 1]} : vector<11x32xf32> to vector<1x3xf32>
    %11 = vector.extract_strided_slice %1 {offsets = [1, 0], sizes = [1, 3], strides = [1, 1]} : vector<11x32xf32> to vector<1x3xf32>
    %cst_5 = arith.constant dense<0.000000e+00> : vector<3xf32>
    %12 = vector.multi_reduction <add>, %9, %cst_5 [0] : vector<8x3xf32> to vector<3xf32>
    %13 = vector.shape_cast %12 : vector<3xf32> to vector<1x3xf32>
    %cst_6 = arith.constant 1.250000e-01 : f32
    %14 = vector.broadcast %cst_6 : f32 to vector<1x3xf32>
    %15 = arith.mulf %13, %14 : vector<1x3xf32>
    %16 = vector.broadcast %15 : vector<1x3xf32> to vector<8x3xf32>
    %17 = arith.subf %9, %16 : vector<8x3xf32>
    %18 = arith.mulf %17, %17 : vector<8x3xf32>
    %cst_7 = arith.constant dense<0.000000e+00> : vector<3xf32>
    %19 = vector.multi_reduction <add>, %18, %cst_7 [0] : vector<8x3xf32> to vector<3xf32>
    %20 = vector.shape_cast %19 : vector<3xf32> to vector<1x3xf32>
    %cst_8 = arith.constant 1.250000e-01 : f32
    %21 = vector.broadcast %cst_8 : f32 to vector<1x3xf32>
    %22 = arith.mulf %20, %21 : vector<1x3xf32>
    %cst_9 = arith.constant 9.99999974E-6 : f32
    %23 = vector.broadcast %cst_9 : f32 to vector<1x3xf32>
    %24 = arith.addf %22, %23 : vector<1x3xf32>
    %25 = math.rsqrt %24 : vector<1x3xf32>
    %26 = arith.mulf %10, %25 : vector<1x3xf32>
    %27 = vector.broadcast %26 : vector<1x3xf32> to vector<8x3xf32>
    %28 = arith.mulf %17, %27 : vector<8x3xf32>
    %29 = vector.broadcast %11 : vector<1x3xf32> to vector<8x3xf32>
    %30 = arith.addf %28, %29 : vector<8x3xf32>
    %cst_10 = arith.constant 0.000000e+00 : f32
    %31 = vector.broadcast %cst_10 : f32 to vector<8x3xf32>
    %32 = arith.maximumf %30, %31 : vector<8x3xf32>
    %c0_11 = arith.constant 0 : index
    %c0_12 = arith.constant 0 : index
    %33 = vector.load %arg3[%c0_11, %c0_12] : memref<7x4xf32, #tpu.memory_space<vmem>>, vector<7x4xf32>
    %34 = tpu.iota {dimensions = array<i32: 1>} : vector<8x7xi32>
    %35 = vector.extract_strided_slice %0 {offsets = [0, 1], sizes = [8, 1], strides = [1, 1]} : vector<8x3xi32> to vector<8x1xi32>
    %36 = vector.broadcast %35 : vector<8x1xi32> to vector<8x7xi32>
    %37 = arith.cmpi eq, %34, %36 : vector<8x7xi32>
    %38 = arith.extui %37 : vector<8x7xi1> to vector<8x7xi32>
    %39 = arith.sitofp %38 : vector<8x7xi32> to vector<8x7xf32>
    %cst_13 = arith.constant dense<0.000000e+00> : vector<8x4xf32>
    %40 = tpu.matmul %39, %33, %cst_13 {dimension_numbers = #tpu.dot_dimension_numbers<[1], [0], [0], [1], [0, 0, 1, 1], [], []>} : vector<8x7xf32>, vector<7x4xf32>, vector<8x4xf32> -> vector<8x4xf32>
    %41 = vector.extract_strided_slice %1 {offsets = [2, 0], sizes = [1, 4], strides = [1, 1]} : vector<11x32xf32> to vector<1x4xf32>
    %42 = vector.extract_strided_slice %1 {offsets = [3, 0], sizes = [1, 4], strides = [1, 1]} : vector<11x32xf32> to vector<1x4xf32>
    %cst_14 = arith.constant dense<0.000000e+00> : vector<4xf32>
    %43 = vector.multi_reduction <add>, %40, %cst_14 [0] : vector<8x4xf32> to vector<4xf32>
    %44 = vector.shape_cast %43 : vector<4xf32> to vector<1x4xf32>
    %cst_15 = arith.constant 1.250000e-01 : f32
    %45 = vector.broadcast %cst_15 : f32 to vector<1x4xf32>
    %46 = arith.mulf %44, %45 : vector<1x4xf32>
    %47 = vector.broadcast %46 : vector<1x4xf32> to vector<8x4xf32>
    %48 = arith.subf %40, %47 : vector<8x4xf32>
    %49 = arith.mulf %48, %48 : vector<8x4xf32>
    %cst_16 = arith.constant dense<0.000000e+00> : vector<4xf32>
    %50 = vector.multi_reduction <add>, %49, %cst_16 [0] : vector<8x4xf32> to vector<4xf32>
    %51 = vector.shape_cast %50 : vector<4xf32> to vector<1x4xf32>
    %cst_17 = arith.constant 1.250000e-01 : f32
    %52 = vector.broadcast %cst_17 : f32 to vector<1x4xf32>
    %53 = arith.mulf %51, %52 : vector<1x4xf32>
    %cst_18 = arith.constant 9.99999974E-6 : f32
    %54 = vector.broadcast %cst_18 : f32 to vector<1x4xf32>
    %55 = arith.addf %53, %54 : vector<1x4xf32>
    %56 = math.rsqrt %55 : vector<1x4xf32>
    %57 = arith.mulf %41, %56 : vector<1x4xf32>
    %58 = vector.broadcast %57 : vector<1x4xf32> to vector<8x4xf32>
    %59 = arith.mulf %48, %58 : vector<8x4xf32>
    %60 = vector.broadcast %42 : vector<1x4xf32> to vector<8x4xf32>
    %61 = arith.addf %59, %60 : vector<8x4xf32>
    %cst_19 = arith.constant 0.000000e+00 : f32
    %62 = vector.broadcast %cst_19 : f32 to vector<8x4xf32>
    %63 = arith.maximumf %61, %62 : vector<8x4xf32>
    %c0_20 = arith.constant 0 : index
    %c0_21 = arith.constant 0 : index
    %64 = vector.load %arg4[%c0_20, %c0_21] : memref<20x5xf32, #tpu.memory_space<vmem>>, vector<20x5xf32>
    %65 = tpu.iota {dimensions = array<i32: 1>} : vector<8x20xi32>
    %66 = vector.extract_strided_slice %0 {offsets = [0, 2], sizes = [8, 1], strides = [1, 1]} : vector<8x3xi32> to vector<8x1xi32>
    %67 = vector.broadcast %66 : vector<8x1xi32> to vector<8x20xi32>
    %68 = arith.cmpi eq, %65, %67 : vector<8x20xi32>
    %69 = arith.extui %68 : vector<8x20xi1> to vector<8x20xi32>
    %70 = arith.sitofp %69 : vector<8x20xi32> to vector<8x20xf32>
    %cst_22 = arith.constant dense<0.000000e+00> : vector<8x5xf32>
    %71 = tpu.matmul %70, %64, %cst_22 {dimension_numbers = #tpu.dot_dimension_numbers<[1], [0], [0], [1], [0, 0, 1, 1], [], []>} : vector<8x20xf32>, vector<20x5xf32>, vector<8x5xf32> -> vector<8x5xf32>
    %72 = vector.extract_strided_slice %1 {offsets = [4, 0], sizes = [1, 5], strides = [1, 1]} : vector<11x32xf32> to vector<1x5xf32>
    %73 = vector.extract_strided_slice %1 {offsets = [5, 0], sizes = [1, 5], strides = [1, 1]} : vector<11x32xf32> to vector<1x5xf32>
    %cst_23 = arith.constant dense<0.000000e+00> : vector<5xf32>
    %74 = vector.multi_reduction <add>, %71, %cst_23 [0] : vector<8x5xf32> to vector<5xf32>
    %75 = vector.shape_cast %74 : vector<5xf32> to vector<1x5xf32>
    %cst_24 = arith.constant 1.250000e-01 : f32
    %76 = vector.broadcast %cst_24 : f32 to vector<1x5xf32>
    %77 = arith.mulf %75, %76 : vector<1x5xf32>
    %78 = vector.broadcast %77 : vector<1x5xf32> to vector<8x5xf32>
    %79 = arith.subf %71, %78 : vector<8x5xf32>
    %80 = arith.mulf %79, %79 : vector<8x5xf32>
    %cst_25 = arith.constant dense<0.000000e+00> : vector<5xf32>
    %81 = vector.multi_reduction <add>, %80, %cst_25 [0] : vector<8x5xf32> to vector<5xf32>
    %82 = vector.shape_cast %81 : vector<5xf32> to vector<1x5xf32>
    %cst_26 = arith.constant 1.250000e-01 : f32
    %83 = vector.broadcast %cst_26 : f32 to vector<1x5xf32>
    %84 = arith.mulf %82, %83 : vector<1x5xf32>
    %cst_27 = arith.constant 9.99999974E-6 : f32
    %85 = vector.broadcast %cst_27 : f32 to vector<1x5xf32>
    %86 = arith.addf %84, %85 : vector<1x5xf32>
    %87 = math.rsqrt %86 : vector<1x5xf32>
    %88 = arith.mulf %72, %87 : vector<1x5xf32>
    %89 = vector.broadcast %88 : vector<1x5xf32> to vector<8x5xf32>
    %90 = arith.mulf %79, %89 : vector<8x5xf32>
    %91 = vector.broadcast %73 : vector<1x5xf32> to vector<8x5xf32>
    %92 = arith.addf %90, %91 : vector<8x5xf32>
    %cst_28 = arith.constant 0.000000e+00 : f32
    %93 = vector.broadcast %cst_28 : f32 to vector<8x5xf32>
    %94 = arith.maximumf %92, %93 : vector<8x5xf32>
    %c0_29 = arith.constant 0 : index
    %c0_30 = arith.constant 0 : index
    %95 = vector.load %arg1[%c0_29, %c0_30] : memref<8x4xf32, #tpu.memory_space<vmem>>, vector<8x4xf32>
    %96 = tpu.concatenate %32, %63, %94, %95 in 1 : vector<8x3xf32>, vector<8x4xf32>, vector<8x5xf32>, vector<8x4xf32> -> vector<8x16xf32>
    %c0_31 = arith.constant 0 : index
    %c0_32 = arith.constant 0 : index
    %97 = vector.load %arg5[%c0_31, %c0_32] : memref<16x32xf32, #tpu.memory_space<vmem>>, vector<16x32xf32>
    %cst_33 = arith.constant dense<0.000000e+00> : vector<8x32xf32>
    %98 = tpu.matmul %96, %97, %cst_33 {dimension_numbers = #tpu.dot_dimension_numbers<[1], [0], [0], [1], [0, 0, 1, 1], [], []>} : vector<8x16xf32>, vector<16x32xf32>, vector<8x32xf32> -> vector<8x32xf32>
    %99 = vector.extract_strided_slice %1 {offsets = [6, 0], sizes = [1, 32], strides = [1, 1]} : vector<11x32xf32> to vector<1x32xf32>
    %100 = vector.extract_strided_slice %1 {offsets = [7, 0], sizes = [1, 32], strides = [1, 1]} : vector<11x32xf32> to vector<1x32xf32>
    %cst_34 = arith.constant dense<0.000000e+00> : vector<32xf32>
    %101 = vector.multi_reduction <add>, %98, %cst_34 [0] : vector<8x32xf32> to vector<32xf32>
    %102 = vector.shape_cast %101 : vector<32xf32> to vector<1x32xf32>
    %cst_35 = arith.constant 1.250000e-01 : f32
    %103 = vector.broadcast %cst_35 : f32 to vector<1x32xf32>
    %104 = arith.mulf %102, %103 : vector<1x32xf32>
    %105 = vector.broadcast %104 : vector<1x32xf32> to vector<8x32xf32>
    %106 = arith.subf %98, %105 : vector<8x32xf32>
    %107 = arith.mulf %106, %106 : vector<8x32xf32>
    %cst_36 = arith.constant dense<0.000000e+00> : vector<32xf32>
    %108 = vector.multi_reduction <add>, %107, %cst_36 [0] : vector<8x32xf32> to vector<32xf32>
    %109 = vector.shape_cast %108 : vector<32xf32> to vector<1x32xf32>
    %cst_37 = arith.constant 1.250000e-01 : f32
    %110 = vector.broadcast %cst_37 : f32 to vector<1x32xf32>
    %111 = arith.mulf %109, %110 : vector<1x32xf32>
    %cst_38 = arith.constant 9.99999974E-6 : f32
    %112 = vector.broadcast %cst_38 : f32 to vector<1x32xf32>
    %113 = arith.addf %111, %112 : vector<1x32xf32>
    %114 = math.rsqrt %113 : vector<1x32xf32>
    %115 = arith.mulf %99, %114 : vector<1x32xf32>
    %116 = vector.broadcast %115 : vector<1x32xf32> to vector<8x32xf32>
    %117 = arith.mulf %106, %116 : vector<8x32xf32>
    %118 = vector.broadcast %100 : vector<1x32xf32> to vector<8x32xf32>
    %119 = arith.addf %117, %118 : vector<8x32xf32>
    %cst_39 = arith.constant 0.000000e+00 : f32
    %120 = vector.broadcast %cst_39 : f32 to vector<8x32xf32>
    %121 = arith.maximumf %119, %120 : vector<8x32xf32>
    %c0_40 = arith.constant 0 : index
    %c0_41 = arith.constant 0 : index
    %122 = vector.load %arg6[%c0_40, %c0_41] : memref<32x16xf32, #tpu.memory_space<vmem>>, vector<32x16xf32>
    %cst_42 = arith.constant dense<0.000000e+00> : vector<8x16xf32>
    %123 = tpu.matmul %121, %122, %cst_42 {dimension_numbers = #tpu.dot_dimension_numbers<[1], [0], [0], [1], [0, 0, 1, 1], [], []>} : vector<8x32xf32>, vector<32x16xf32>, vector<8x16xf32> -> vector<8x16xf32>
    %124 = vector.extract_strided_slice %1 {offsets = [8, 0], sizes = [1, 16], strides = [1, 1]} : vector<11x32xf32> to vector<1x16xf32>
    %125 = vector.extract_strided_slice %1 {offsets = [9, 0], sizes = [1, 16], strides = [1, 1]} : vector<11x32xf32> to vector<1x16xf32>
    %cst_43 = arith.constant dense<0.000000e+00> : vector<16xf32>
    %126 = vector.multi_reduction <add>, %123, %cst_43 [0] : vector<8x16xf32> to vector<16xf32>
    %127 = vector.shape_cast %126 : vector<16xf32> to vector<1x16xf32>
    %cst_44 = arith.constant 1.250000e-01 : f32
    %128 = vector.broadcast %cst_44 : f32 to vector<1x16xf32>
    %129 = arith.mulf %127, %128 : vector<1x16xf32>
    %130 = vector.broadcast %129 : vector<1x16xf32> to vector<8x16xf32>
    %131 = arith.subf %123, %130 : vector<8x16xf32>
    %132 = arith.mulf %131, %131 : vector<8x16xf32>
    %cst_45 = arith.constant dense<0.000000e+00> : vector<16xf32>
    %133 = vector.multi_reduction <add>, %132, %cst_45 [0] : vector<8x16xf32> to vector<16xf32>
    %134 = vector.shape_cast %133 : vector<16xf32> to vector<1x16xf32>
    %cst_46 = arith.constant 1.250000e-01 : f32
    %135 = vector.broadcast %cst_46 : f32 to vector<1x16xf32>
    %136 = arith.mulf %134, %135 : vector<1x16xf32>
    %cst_47 = arith.constant 9.99999974E-6 : f32
    %137 = vector.broadcast %cst_47 : f32 to vector<1x16xf32>
    %138 = arith.addf %136, %137 : vector<1x16xf32>
    %139 = math.rsqrt %138 : vector<1x16xf32>
    %140 = arith.mulf %124, %139 : vector<1x16xf32>
    %141 = vector.broadcast %140 : vector<1x16xf32> to vector<8x16xf32>
    %142 = arith.mulf %131, %141 : vector<8x16xf32>
    %143 = vector.broadcast %125 : vector<1x16xf32> to vector<8x16xf32>
    %144 = arith.addf %142, %143 : vector<8x16xf32>
    %cst_48 = arith.constant 0.000000e+00 : f32
    %145 = vector.broadcast %cst_48 : f32 to vector<8x16xf32>
    %146 = arith.maximumf %144, %145 : vector<8x16xf32>
    %c0_49 = arith.constant 0 : index
    %c0_50 = arith.constant 0 : index
    %147 = vector.load %arg7[%c0_49, %c0_50] : memref<1x16xf32, #tpu.memory_space<vmem>>, vector<1x16xf32>
    %148 = vector.extract_strided_slice %1 {offsets = [10, 0], sizes = [1, 1], strides = [1, 1]} : vector<11x32xf32> to vector<1x1xf32>
    %cst_51 = arith.constant dense<0.000000e+00> : vector<1x8xf32>
    %149 = tpu.matmul %147, %146, %cst_51 {dimension_numbers = #tpu.dot_dimension_numbers<[1], [1], [0], [0], [0, 0, 1, 0], [], []>} : vector<1x16xf32>, vector<8x16xf32>, vector<1x8xf32> -> vector<1x8xf32>
    %150 = vector.broadcast %148 : vector<1x1xf32> to vector<1x8xf32>
    %151 = arith.addf %149, %150 : vector<1x8xf32>
    %c0_52 = arith.constant 0 : index
    %c0_53 = arith.constant 0 : index
    %152 = vector.load %arg9[%c0_52, %c0_53] : memref<1x8xf32, #tpu.memory_space<vmem>>, vector<1x8xf32>
    tpu.vector_store %arg9[%c0_52, %c0_53], %151 {strides = array<i32>} : memref<1x8xf32, #tpu.memory_space<vmem>>, vector<1x8xf32>,
    return
  }
}

</mosaic_0001>

<llo_original>
// kernel: tpu_custom_call.1
$region0: #{tpu_custom_call.1}
  #allocation0 [shape = 'u32[]', space=smem, size = 0x4, offset = 0x4, fixed_abs, tag = 'smem constant byte address 0x4 - core index']
  #allocation1 [shape = 'u32[144,128]{1,0:T(1,128)}', space=vmem, size = 0x12000, scoped, tag = 'internal scratch']
  %s0 = inlined_call_operand.vmem [shape: s32[8,3], index: 0, kind: input, shape index: {}]
  %s1 = inlined_call_operand.vmem [shape: f32[8,4], index: 1, kind: input, shape index: {}]
  %s2 = inlined_call_operand.vmem [shape: f32[10,3], index: 2, kind: input, shape index: {}]
  %s3 = inlined_call_operand.vmem [shape: f32[7,4], index: 3, kind: input, shape index: {}]
  %s4 = inlined_call_operand.vmem [shape: f32[20,5], index: 4, kind: input, shape index: {}]
  %s5 = inlined_call_operand.vmem [shape: f32[16,32], index: 5, kind: input, shape index: {}]
  %s6 = inlined_call_operand.vmem [shape: f32[32,16], index: 6, kind: input, shape index: {}]
  %s7 = inlined_call_operand.vmem [shape: f32[1,16], index: 7, kind: input, shape index: {}]
  %s8 = inlined_call_operand.vmem [shape: f32[11,32], index: 8, kind: input, shape index: {}]
  %s9 = inlined_call_operand.hbm [shape: f32[1,8], index: 9, kind: output, shape index: {}]
  %s10 = sld [smem:[#allocation0]]
  $region46: #{tpu_custom_call.1} parent=0
    _
  %s12 = ssub.s32 1, %s10
  %s13 = scalar_select 0, %s12, %s10
  $region1: #{tpu_custom_call.1} parent=0
    #allocation2 [shape = 'u8[512]{0}', space=vmem, size = 0x400, scoped, tag = 'output window, operand 0, single buffered']
    #allocation3 [shape = 's32[1]{0}', space=sflag, size = 0x4, scoped, tag = 'scoped memory for tpu_custom_call.1']
    %14 = vsyncpa [#allocation3], 0
    // Predicated region
    $region2: #{tpu_custom_call.1} parent=1 // pred_check
      _
    $region3: #{tpu_custom_call.1} parent=1 // pred_check_branch
      %16 = sbr.rel (0) target = $region5
    $region4: #{tpu_custom_call.1} parent=1 // pred_region
      _
    $region5: #{tpu_custom_call.1} parent=1 // pred_fallthru
      _
    // Predicated region
    $region6: #{tpu_custom_call.1} parent=1 // pred_check
      _
    $region7: #{tpu_custom_call.1} parent=1 // pred_check_branch
      %18 = sbr.rel (0) target = $region9
    $region8: #{tpu_custom_call.1} parent=1 // pred_region
      _
    $region9: #{tpu_custom_call.1} parent=1 // pred_fallthru
      _
    // Predicated region
    $region10: #{tpu_custom_call.1} parent=1 // pred_check
      _
    $region11: #{tpu_custom_call.1} parent=1 // pred_check_branch
      %20 = sbr.rel (0) target = $region13
    $region12: #{tpu_custom_call.1} parent=1 // pred_region
      _
    $region13: #{tpu_custom_call.1} parent=1 // pred_fallthru
      _
    // Predicated region
    $region14: #{tpu_custom_call.1} parent=1 // pred_check
      _
    $region15: #{tpu_custom_call.1} parent=1 // pred_check_branch
      %22 = sbr.rel (0) target = $region17
    $region16: #{tpu_custom_call.1} parent=1 // pred_region
      _
    $region17: #{tpu_custom_call.1} parent=1 // pred_fallthru
      _
    // Predicated region
    $region18: #{tpu_custom_call.1} parent=1 // pred_check
      _
    $region19: #{tpu_custom_call.1} parent=1 // pred_check_branch
      %24 = sbr.rel (0) target = $region21
    $region20: #{tpu_custom_call.1} parent=1 // pred_region
      _
    $region21: #{tpu_custom_call.1} parent=1 // pred_fallthru
      _
    // Predicated region
    $region22: #{tpu_custom_call.1} parent=1 // pred_check
      _
    $region23: #{tpu_custom_call.1} parent=1 // pred_check_branch
      %26 = sbr.rel (0) target = $region25
    $region24: #{tpu_custom_call.1} parent=1 // pred_region
      _
    $region25: #{tpu_custom_call.1} parent=1 // pred_fallthru
      _
    // Predicated region
    $region26: #{tpu_custom_call.1} parent=1 // pred_check
      _
    $region27: #{tpu_custom_call.1} parent=1 // pred_check_branch
      %28 = sbr.rel (0) target = $region29
    $region28: #{tpu_custom_call.1} parent=1 // pred_region
      _
    $region29: #{tpu_custom_call.1} parent=1 // pred_fallthru
      _
    // Predicated region
    $region30: #{tpu_custom_call.1} parent=1 // pred_check
      _
    $region31: #{tpu_custom_call.1} parent=1 // pred_check_branch
      %30 = sbr.rel (0) target = $region33
    $region32: #{tpu_custom_call.1} parent=1 // pred_region
      _
    $region33: #{tpu_custom_call.1} parent=1 // pred_fallthru
      _
    // Predicated region
    $region34: #{tpu_custom_call.1} parent=1 // pred_check
      _
    $region35: #{tpu_custom_call.1} parent=1 // pred_check_branch
      %32 = sbr.rel (0) target = $region37
    $region36: #{tpu_custom_call.1} parent=1 // pred_region
      _
    $region37: #{tpu_custom_call.1} parent=1 // pred_fallthru
      _
    %v33 = vld [vmem:[%s0] sm:$0xff]
    %v34 = vld [vmem:[%s8] sm:$0xff]
    %v35 = vld [vmem:[%s8 + $0x8] sm:$0x7]
    %v36 = vld [vmem:[%s2] sm:$0xff]
    %v37 = vld [vmem:[%s2 + $0x8] sm:$0x3]
    %v38 = vlaneseq
    %v39 = vand.u32 %v38, 127
    %40 = vset.pattern.permute.xlu0 0
    %41 = vperm.xlu0 %40, %v33
    %v42 = vpop.permute.xlu0 %41
    %vm43 = vcmp.eq.s32.totalorder %v39, %v42
    %v44 = vsel %vm43, 1, 0
    %v45 = vcvt.s32.f32 %v44
    %vm46 = vcmask 80896
    %v48 = vsel %vm46, %v45, 0
    %vm50 = vcmask 1041408
    %v52 = vsel %vm50, %v37, 0
    %54 = vmatprep.subr.mxu0 0.0
    %55 = vmatpush1.msra.mxu0 %v36
    %56 = vmatprep.subr.mxu0 0.0
    %57 = vmatpush1.msra.mxu0 %v52
    %58 = vmatprep.subr.mxu0 0.0
    %59 = vmatpush1.msra.mxu0 0.0
    %60 = vmatprep.subr.mxu0 0.0
    %61 = vmatpush1.msra.mxu0 0.0
    %62 = vmatprep.subr.mxu0 0.0
    %63 = vmatpush1.msra.mxu0 0.0
    %64 = vmatprep.subr.mxu0 0.0
    %65 = vmatpush1.msra.mxu0 0.0
    %66 = vmatprep.subr.mxu0 0.0
    %67 = vmatpush1.msra.mxu0 0.0
    %68 = vmatprep.subr.mxu0 0.0
    %69 = vmatpush1.msra.mxu0 0.0
    %70 = vmatprep.subr.mxu0 0.0
    %71 = vmatpush1.msra.mxu0 0.0
    %72 = vmatprep.subr.mxu0 0.0
    %73 = vmatpush1.msra.mxu0 0.0
    %74 = vmatprep.subr.mxu0 0.0
    %75 = vmatpush1.msra.mxu0 0.0
    %76 = vmatprep.subr.mxu0 0.0
    %77 = vmatpush1.msra.mxu0 0.0
    %78 = vmatprep.subr.mxu0 0.0
    %79 = vmatpush1.msra.mxu0 0.0
    %80 = vmatprep.subr.mxu0 0.0
    %81 = vmatpush1.msra.mxu0 0.0
    %82 = vmatprep.subr.mxu0 0.0
    %83 = vmatpush1.msra.mxu0 0.0
    %84 = vmatprep.subr.mxu0 0.0
    %85 = vmatpush1.msra.mxu0 0.0
    %86 = vmatprep.subr.mxu0 0.0
    %87 = vmatpush1.msra.mxu0 0.0
    %88 = vmatprep.subr.mxu0 0.0
    %89 = vmatpush1.msra.mxu0 0.0
    %90 = vmatprep.subr.mxu0 0.0
    %91 = vmatpush1.msra.mxu0 0.0
    %92 = vmatprep.subr.mxu0 0.0
    %93 = vmatpush1.msra.mxu0 0.0
    %94 = vmatprep.subr.mxu0 0.0
    %95 = vmatpush1.msra.mxu0 0.0
    %96 = vmatprep.subr.mxu0 0.0
    %97 = vmatpush1.msra.mxu0 0.0
    %98 = vmatprep.subr.mxu0 0.0
    %99 = vmatpush1.msra.mxu0 0.0
    %100 = vmatprep.subr.mxu0 0.0
    %101 = vmatpush1.msra.mxu0 0.0
    %102 = vmatprep.subr.mxu0 0.0
    %103 = vmatpush1.msra.mxu0 0.0
    %104 = vmatprep.subr.mxu0 0.0
    %105 = vmatpush1.msra.mxu0 0.0
    %106 = vmatprep.subr.mxu0 0.0
    %107 = vmatpush1.msra.mxu0 0.0
    %108 = vmatprep.subr.mxu0 0.0
    %109 = vmatpush1.msra.mxu0 0.0
    %110 = vmatprep.subr.mxu0 0.0
    %111 = vmatpush1.msra.mxu0 0.0
    %112 = vmatprep.subr.mxu0 0.0
    %113 = vmatpush1.msra.mxu0 0.0
    %114 = vmatprep.subr.mxu0 0.0
    %115 = vmatpush1.msra.mxu0 0.0
    %116 = vmatprep.subr.mxu0 0.0
    %117 = vmatpush1.msra.mxu0 0.0
    %118 = vmatprep.mubr.f32.mxu0 0.0
    %119 = vmatmul.mubr.f32.gmra.mrb[0].mxu0 %v48
    %v120 = vpop.f32.mrb[0].mxu0
    %v121 = vadd.f32 0.0, %v120
    %v122 = vpop.f32.mrb[0].mxu0
    %123 = vdwg.mxu0
    %vm124 = vcmask 23552
    %v125 = vsel %vm124, %v121, 0.0
    %v126 = vrot.slane %v125, 4
    %v127 = vadd.f32 %v125, %v126
    %v128 = vrot.slane %v127, 2
    %v129 = vadd.f32 %v127, %v128
    %v130 = vrot.slane %v129, 1
    %v131 = vadd.f32 %v129, %v130
    %v132 = vmul.f32 %v131, 0.125
    %v133 = vsub.f32 %v121, %v132
    %v134 = vmul.f32 %v133, %v133
    %v135 = vsel %vm124, %v134, 0.0
    %v136 = vrot.slane %v135, 4
    %v137 = vadd.f32 %v135, %v136
    %v138 = vrot.slane %v137, 2
    %v139 = vadd.f32 %v137, %v138
    %v140 = vrot.slane %v139, 1
    %v141 = vadd.f32 %v139, %v140
    %v142 = vmul.f32 %v141, 0.125
    %v143 = vadd.f32 %v142, 1e-05
    %v144 = vrsqrt.pop %v143
    %v145 = vmul.f32 %v34, %v144
    %v146 = vlaneseq
    %v147 = vshrl.u32 %v146, 7
    %v148 = vsub.s32 0, %v147
    %v149 = vrot.slane %v145, %v148
    %v150 = vmul.f32 %v133, %v149
    %v151 = vlaneseq
    %v152 = vshrl.u32 %v151, 7
    %v153 = vsub.s32 1, %v152
    %v154 = vrot.slane %v34, %v153
    %v155 = vadd.f32 %v150, %v154
    %v156 = vmax.f32 %v155, 0.0
    %v157 = vld [vmem:[%s3] sm:$0x7f]
    %158 = vset.pattern.permute.xlu0 1
    %159 = vperm.xlu0 %158, %v33
    %v160 = vpop.permute.xlu0 %159
    %vm161 = vcmp.eq.s32.totalorder %v39, %v160
    %v162 = vsel %vm161, 1, 0
    %v163 = vcvt.s32.f32 %v162
    %vm164 = vcmask 56320
    %v166 = vsel %vm164, %v163, 0
    %vm168 = vcmask 1046528
    %v170 = vsel %vm168, %v157, 0
    %172 = vmatprep.subr.mxu0 0.0
    %173 = vmatpush1.msra.mxu0 %v170
    %174 = vmatprep.subr.mxu0 0.0
    %175 = vmatpush1.msra.mxu0 0.0
    %176 = vmatprep.subr.mxu0 0.0
    %177 = vmatpush1.msra.mxu0 0.0
    %178 = vmatprep.subr.mxu0 0.0
    %179 = vmatpush1.msra.mxu0 0.0
    %180 = vmatprep.subr.mxu0 0.0
    %181 = vmatpush1.msra.mxu0 0.0
    %182 = vmatprep.subr.mxu0 0.0
    %183 = vmatpush1.msra.mxu0 0.0
    %184 = vmatprep.subr.mxu0 0.0
    %185 = vmatpush1.msra.mxu0 0.0
    %186 = vmatprep.subr.mxu0 0.0
    %187 = vmatpush1.msra.mxu0 0.0
    %188 = vmatprep.subr.mxu0 0.0
    %189 = vmatpush1.msra.mxu0 0.0
    %190 = vmatprep.subr.mxu0 0.0
    %191 = vmatpush1.msra.mxu0 0.0
    %192 = vmatprep.subr.mxu0 0.0
    %193 = vmatpush1.msra.mxu0 0.0
    %194 = vmatprep.subr.mxu0 0.0
    %195 = vmatpush1.msra.mxu0 0.0
    %196 = vmatprep.subr.mxu0 0.0
    %197 = vmatpush1.msra.mxu0 0.0
    %198 = vmatprep.subr.mxu0 0.0
    %199 = vmatpush1.msra.mxu0 0.0
    %200 = vmatprep.subr.mxu0 0.0
    %201 = vmatpush1.msra.mxu0 0.0
    %202 = vmatprep.subr.mxu0 0.0
    %203 = vmatpush1.msra.mxu0 0.0
    %204 = vmatprep.subr.mxu0 0.0
    %205 = vmatpush1.msra.mxu0 0.0
    %206 = vmatprep.subr.mxu0 0.0
    %207 = vmatpush1.msra.mxu0 0.0
    %208 = vmatprep.subr.mxu0 0.0
    %209 = vmatpush1.msra.mxu0 0.0
    %210 = vmatprep.subr.mxu0 0.0
    %211 = vmatpush1.msra.mxu0 0.0
    %212 = vmatprep.subr.mxu0 0.0
    %213 = vmatpush1.msra.mxu0 0.0
    %214 = vmatprep.subr.mxu0 0.0
    %215 = vmatpush1.msra.mxu0 0.0
    %216 = vmatprep.subr.mxu0 0.0
    %217 = vmatpush1.msra.mxu0 0.0
    %218 = vmatprep.subr.mxu0 0.0
    %219 = vmatpush1.msra.mxu0 0.0
    %220 = vmatprep.subr.mxu0 0.0
    %221 = vmatpush1.msra.mxu0 0.0
    %222 = vmatprep.subr.mxu0 0.0
    %223 = vmatpush1.msra.mxu0 0.0
    %224 = vmatprep.subr.mxu0 0.0
    %225 = vmatpush1.msra.mxu0 0.0
    %226 = vmatprep.subr.mxu0 0.0
    %227 = vmatpush1.msra.mxu0 0.0
    %228 = vmatprep.subr.mxu0 0.0
    %229 = vmatpush1.msra.mxu0 0.0
    %230 = vmatprep.subr.mxu0 0.0
    %231 = vmatpush1.msra.mxu0 0.0
    %232 = vmatprep.subr.mxu0 0.0
    %233 = vmatpush1.msra.mxu0 0.0
    %234 = vmatprep.subr.mxu0 0.0
    %235 = vmatpush1.msra.mxu0 0.0
    %236 = vmatprep.mubr.f32.mxu0 0.0
    %237 = vmatmul.mubr.f32.gmra.mrb[0].mxu0 %v166
    %v238 = vpop.f32.mrb[0].mxu0
    %v239 = vadd.f32 0.0, %v238
    %v240 = vpop.f32.mrb[0].mxu0
    %241 = vdwg.mxu0
    %vm242 = vcmask 31744
    %v243 = vsel %vm242, %v239, 0.0
    %v244 = vrot.slane %v243, 4
    %v245 = vadd.f32 %v243, %v244
    %v246 = vrot.slane %v245, 2
    %v247 = vadd.f32 %v245, %v246
    %v248 = vrot.slane %v247, 1
    %v249 = vadd.f32 %v247, %v248
    %v250 = vmul.f32 %v249, 0.125
    %v251 = vsub.f32 %v239, %v250
    %v252 = vmul.f32 %v251, %v251
    %v253 = vsel %vm242, %v252, 0.0
    %v254 = vrot.slane %v253, 4
    %v255 = vadd.f32 %v253, %v254
    %v256 = vrot.slane %v255, 2
    %v257 = vadd.f32 %v255, %v256
    %v258 = vrot.slane %v257, 1
    %v259 = vadd.f32 %v257, %v258
    %v260 = vmul.f32 %v259, 0.125
    %v261 = vadd.f32 %v260, 1e-05
    %v262 = vrsqrt.pop %v261
    %v263 = vmul.f32 %v34, %v262
    %v264 = vlaneseq
    %v265 = vshrl.u32 %v264, 7
    %v266 = vsub.s32 2, %v265
    %v267 = vrot.slane %v263, %v266
    %v268 = vmul.f32 %v251, %v267
    %v269 = vlaneseq
    %v270 = vshrl.u32 %v269, 7
    %v271 = vsub.s32 3, %v270
    %v272 = vrot.slane %v34, %v271
    %v273 = vadd.f32 %v268, %v272
    %v274 = vmax.f32 %v273, 0.0
    %v275 = vld [vmem:[%s4] sm:$0xff]
    %v276 = vld [vmem:[%s4 + $0x8] sm:$0xff]
    %v277 = vld [vmem:[%s4 + $0x10] sm:$0xf]
    %278 = vset.pattern.permute.xlu0 2
    %279 = vperm.xlu0 %278, %v33
    %v280 = vpop.permute.xlu0 %279
    %vm281 = vcmp.eq.s32.totalorder %v39, %v280
    %v282 = vsel %vm281, 1, 0
    %v283 = vcvt.s32.f32 %v282
    %vm284 = vcmask 162816
    %v286 = vsel %vm284, %v283, 0
    %vm288 = vcmask 1043456
    %v290 = vsel %vm288, %v277, 0
    %292 = vmatprep.subr.mxu0 0.0
    %293 = vmatpush1.msra.mxu0 %v275
    %294 = vmatprep.subr.mxu0 0.0
    %295 = vmatpush1.msra.mxu0 %v276
    %296 = vmatprep.subr.mxu0 0.0
    %297 = vmatpush1.msra.mxu0 %v290
    %298 = vmatprep.subr.mxu0 0.0
    %299 = vmatpush1.msra.mxu0 0.0
    %300 = vmatprep.subr.mxu0 0.0
    %301 = vmatpush1.msra.mxu0 0.0
    %302 = vmatprep.subr.mxu0 0.0
    %303 = vmatpush1.msra.mxu0 0.0
    %304 = vmatprep.subr.mxu0 0.0
    %305 = vmatpush1.msra.mxu0 0.0
    %306 = vmatprep.subr.mxu0 0.0
    %307 = vmatpush1.msra.mxu0 0.0
    %308 = vmatprep.subr.mxu0 0.0
    %309 = vmatpush1.msra.mxu0 0.0
    %310 = vmatprep.subr.mxu0 0.0
    %311 = vmatpush1.msra.mxu0 0.0
    %312 = vmatprep.subr.mxu0 0.0
    %313 = vmatpush1.msra.mxu0 0.0
    %314 = vmatprep.subr.mxu0 0.0
    %315 = vmatpush1.msra.mxu0 0.0
    %316 = vmatprep.subr.mxu0 0.0
    %317 = vmatpush1.msra.mxu0 0.0
    %318 = vmatprep.subr.mxu0 0.0
    %319 = vmatpush1.msra.mxu0 0.0
    %320 = vmatprep.subr.mxu0 0.0
    %321 = vmatpush1.msra.mxu0 0.0
    %322 = vmatprep.subr.mxu0 0.0
    %323 = vmatpush1.msra.mxu0 0.0
    %324 = vmatprep.subr.mxu0 0.0
    %325 = vmatpush1.msra.mxu0 0.0
    %326 = vmatprep.subr.mxu0 0.0
    %327 = vmatpush1.msra.mxu0 0.0
    %328 = vmatprep.subr.mxu0 0.0
    %329 = vmatpush1.msra.mxu0 0.0
    %330 = vmatprep.subr.mxu0 0.0
    %331 = vmatpush1.msra.mxu0 0.0
    %332 = vmatprep.subr.mxu0 0.0
    %333 = vmatpush1.msra.mxu0 0.0
    %334 = vmatprep.subr.mxu0 0.0
    %335 = vmatpush1.msra.mxu0 0.0
    %336 = vmatprep.subr.mxu0 0.0
    %337 = vmatpush1.msra.mxu0 0.0
    %338 = vmatprep.subr.mxu0 0.0
    %339 = vmatpush1.msra.mxu0 0.0
    %340 = vmatprep.subr.mxu0 0.0
    %341 = vmatpush1.msra.mxu0 0.0
    %342 = vmatprep.subr.mxu0 0.0
    %343 = vmatpush1.msra.mxu0 0.0
    %344 = vmatprep.subr.mxu0 0.0
    %345 = vmatpush1.msra.mxu0 0.0
    %346 = vmatprep.subr.mxu0 0.0
    %347 = vmatpush1.msra.mxu0 0.0
    %348 = vmatprep.subr.mxu0 0.0
    %349 = vmatpush1.msra.mxu0 0.0
    %350 = vmatprep.subr.mxu0 0.0
    %351 = vmatpush1.msra.mxu0 0.0
    %352 = vmatprep.subr.mxu0 0.0
    %353 = vmatpush1.msra.mxu0 0.0
    %354 = vmatprep.subr.mxu0 0.0
    %355 = vmatpush1.msra.mxu0 0.0
    %356 = vmatprep.mubr.f32.mxu0 0.0
    %357 = vmatmul.mubr.f32.gmra.mrb[0].mxu0 %v286
    %v358 = vpop.f32.mrb[0].mxu0
    %v359 = vadd.f32 0.0, %v358
    %v360 = vpop.f32.mrb[0].mxu0
    %361 = vdwg.mxu0
    %vm362 = vcmask 39936
    %v363 = vsel %vm362, %v359, 0.0
    %v364 = vrot.slane %v363, 4
    %v365 = vadd.f32 %v363, %v364
    %v366 = vrot.slane %v365, 2
    %v367 = vadd.f32 %v365, %v366
    %v368 = vrot.slane %v367, 1
    %v369 = vadd.f32 %v367, %v368
    %v370 = vmul.f32 %v369, 0.125
    %v371 = vsub.f32 %v359, %v370
    %v372 = vmul.f32 %v371, %v371
    %v373 = vsel %vm362, %v372, 0.0
    %v374 = vrot.slane %v373, 4
    %v375 = vadd.f32 %v373, %v374
    %v376 = vrot.slane %v375, 2
    %v377 = vadd.f32 %v375, %v376
    %v378 = vrot.slane %v377, 1
    %v379 = vadd.f32 %v377, %v378
    %v380 = vmul.f32 %v379, 0.125
    %v381 = vadd.f32 %v380, 1e-05
    %v382 = vrsqrt.pop %v381
    %v383 = vmul.f32 %v34, %v382
    %v384 = vlaneseq
    %v385 = vshrl.u32 %v384, 7
    %v386 = vsub.s32 4, %v385
    %v387 = vrot.slane %v383, %v386
    %v388 = vmul.f32 %v371, %v387
    %v389 = vlaneseq
    %v390 = vshrl.u32 %v389, 7
    %v391 = vsub.s32 5, %v390
    %v392 = vrot.slane %v34, %v391
    %v393 = vadd.f32 %v388, %v392
    %v394 = vmax.f32 %v393, 0.0
    %v395 = vld [vmem:[%s1] sm:$0xff]
    %397 = vrot.lane.b32.xlu0 %v274, 3
    %v398 = vpop.permute.xlu0 %397
    %401 = vrot.lane.b32.xlu0 %v394, 7
    %v402 = vpop.permute.xlu0 %401
    %405 = vrot.lane.b32.xlu0 %v395, 12
    %v406 = vpop.permute.xlu0 %405
    %v408 = vsel %vm124, %v156, %v398
    %v409 = vsel %vm164, %v408, %v402
    %vm410 = vcmask 97280
    %v411 = vsel %vm410, %v409, %v406
    %v412 = vld [vmem:[%s5] sm:$0xff]
    %v413 = vld [vmem:[%s5 + $0x8] sm:$0xff]
    %vm414 = vcmask 130048
    %v416 = vsel %vm414, %v411, 0
    %418 = vmatprep.subr.mxu0 0.0
    %419 = vmatpush1.msra.mxu0 %v412
    %420 = vmatprep.subr.mxu0 0.0
    %421 = vmatpush1.msra.mxu0 %v413
    %422 = vmatprep.subr.mxu0 0.0
    %423 = vmatpush1.msra.mxu0 0.0
    %424 = vmatprep.subr.mxu0 0.0
    %425 = vmatpush1.msra.mxu0 0.0
    %426 = vmatprep.subr.mxu0 0.0
    %427 = vmatpush1.msra.mxu0 0.0
    %428 = vmatprep.subr.mxu0 0.0
    %429 = vmatpush1.msra.mxu0 0.0
    %430 = vmatprep.subr.mxu0 0.0
    %431 = vmatpush1.msra.mxu0 0.0
    %432 = vmatprep.subr.mxu0 0.0
    %433 = vmatpush1.msra.mxu0 0.0
    %434 = vmatprep.subr.mxu0 0.0
    %435 = vmatpush1.msra.mxu0 0.0
    %436 = vmatprep.subr.mxu0 0.0
    %437 = vmatpush1.msra.mxu0 0.0
    %438 = vmatprep.subr.mxu0 0.0
    %439 = vmatpush1.msra.mxu0 0.0
    %440 = vmatprep.subr.mxu0 0.0
    %441 = vmatpush1.msra.mxu0 0.0
    %442 = vmatprep.subr.mxu0 0.0
    %443 = vmatpush1.msra.mxu0 0.0
    %444 = vmatprep.subr.mxu0 0.0
    %445 = vmatpush1.msra.mxu0 0.0
    %446 = vmatprep.subr.mxu0 0.0
    %447 = vmatpush1.msra.mxu0 0.0
    %448 = vmatprep.subr.mxu0 0.0
    %449 = vmatpush1.msra.mxu0 0.0
    %450 = vmatprep.subr.mxu0 0.0
    %451 = vmatpush1.msra.mxu0 0.0
    %452 = vmatprep.subr.mxu0 0.0
    %453 = vmatpush1.msra.mxu0 0.0
    %454 = vmatprep.subr.mxu0 0.0
    %455 = vmatpush1.msra.mxu0 0.0
    %456 = vmatprep.subr.mxu0 0.0
    %457 = vmatpush1.msra.mxu0 0.0
    %458 = vmatprep.subr.mxu0 0.0
    %459 = vmatpush1.msra.mxu0 0.0
    %460 = vmatprep.subr.mxu0 0.0
    %461 = vmatpush1.msra.mxu0 0.0
    %462 = vmatprep.subr.mxu0 0.0
    %463 = vmatpush1.msra.mxu0 0.0
    %464 = vmatprep.subr.mxu0 0.0
    %465 = vmatpush1.msra.mxu0 0.0
    %466 = vmatprep.subr.mxu0 0.0
    %467 = vmatpush1.msra.mxu0 0.0
    %468 = vmatprep.subr.mxu0 0.0
    %469 = vmatpush1.msra.mxu0 0.0
    %470 = vmatprep.subr.mxu0 0.0
    %471 = vmatpush1.msra.mxu0 0.0
    %472 = vmatprep.subr.mxu0 0.0
    %473 = vmatpush1.msra.mxu0 0.0
    %474 = vmatprep.subr.mxu0 0.0
    %475 = vmatpush1.msra.mxu0 0.0
    %476 = vmatprep.subr.mxu0 0.0
    %477 = vmatpush1.msra.mxu0 0.0
    %478 = vmatprep.subr.mxu0 0.0
    %479 = vmatpush1.msra.mxu0 0.0
    %480 = vmatprep.subr.mxu0 0.0
    %481 = vmatpush1.msra.mxu0 0.0
    %482 = vmatprep.mubr.f32.mxu0 0.0
    %483 = vmatmul.mubr.f32.gmra.mrb[0].mxu0 %v416
    %v484 = vpop.f32.mrb[0].mxu0
    %v485 = vadd.f32 0.0, %v484
    %v486 = vpop.f32.mrb[0].mxu0
    %487 = vdwg.mxu0
    %vm488 = vcmask 261120
    %v489 = vsel %vm488, %v485, 0.0
    %v490 = vrot.slane %v489, 4
    %v491 = vadd.f32 %v489, %v490
    %v492 = vrot.slane %v491, 2
    %v493 = vadd.f32 %v491, %v492
    %v494 = vrot.slane %v493, 1
    %v495 = vadd.f32 %v493, %v494
    %v496 = vmul.f32 %v495, 0.125
    %v497 = vsub.f32 %v485, %v496
    %v498 = vmul.f32 %v497, %v497
    %v499 = vsel %vm488, %v498, 0.0
    %v500 = vrot.slane %v499, 4
    %v501 = vadd.f32 %v499, %v500
    %v502 = vrot.slane %v501, 2
    %v503 = vadd.f32 %v501, %v502
    %v504 = vrot.slane %v503, 1
    %v505 = vadd.f32 %v503, %v504
    %v506 = vmul.f32 %v505, 0.125
    %v507 = vadd.f32 %v506, 1e-05
    %v508 = vrsqrt.pop %v507
    %v509 = vmul.f32 %v34, %v508
    %v510 = vlaneseq
    %v511 = vshrl.u32 %v510, 7
    %v512 = vsub.s32 6, %v511
    %v513 = vrot.slane %v509, %v512
    %v514 = vmul.f32 %v497, %v513
    %v515 = vlaneseq
    %v516 = vshrl.u32 %v515, 7
    %v517 = vsub.s32 7, %v516
    %v518 = vrot.slane %v34, %v517
    %v519 = vadd.f32 %v514, %v518
    %v520 = vmax.f32 %v519, 0.0
    %v521 = vld [vmem:[%s6] sm:$0xff]
    %v522 = vld [vmem:[%s6 + $0x8] sm:$0xff]
    %v523 = vld [vmem:[%s6 + $0x10] sm:$0xff]
    %v524 = vld [vmem:[%s6 + $0x18] sm:$0xff]
    %v526 = vsel %vm488, %v520, 0
    %528 = vmatprep.subr.mxu0 0.0
    %529 = vmatpush1.msra.mxu0 %v521
    %530 = vmatprep.subr.mxu0 0.0
    %531 = vmatpush1.msra.mxu0 %v522
    %532 = vmatprep.subr.mxu0 0.0
    %533 = vmatpush1.msra.mxu0 %v523
    %534 = vmatprep.subr.mxu0 0.0
    %535 = vmatpush1.msra.mxu0 %v524
    %536 = vmatprep.subr.mxu0 0.0
    %537 = vmatpush1.msra.mxu0 0.0
    %538 = vmatprep.subr.mxu0 0.0
    %539 = vmatpush1.msra.mxu0 0.0
    %540 = vmatprep.subr.mxu0 0.0
    %541 = vmatpush1.msra.mxu0 0.0
    %542 = vmatprep.subr.mxu0 0.0
    %543 = vmatpush1.msra.mxu0 0.0
    %544 = vmatprep.subr.mxu0 0.0
    %545 = vmatpush1.msra.mxu0 0.0
    %546 = vmatprep.subr.mxu0 0.0
    %547 = vmatpush1.msra.mxu0 0.0
    %548 = vmatprep.subr.mxu0 0.0
    %549 = vmatpush1.msra.mxu0 0.0
    %550 = vmatprep.subr.mxu0 0.0
    %551 = vmatpush1.msra.mxu0 0.0
    %552 = vmatprep.subr.mxu0 0.0
    %553 = vmatpush1.msra.mxu0 0.0
    %554 = vmatprep.subr.mxu0 0.0
    %555 = vmatpush1.msra.mxu0 0.0
    %556 = vmatprep.subr.mxu0 0.0
    %557 = vmatpush1.msra.mxu0 0.0
    %558 = vmatprep.subr.mxu0 0.0
    %559 = vmatpush1.msra.mxu0 0.0
    %560 = vmatprep.subr.mxu0 0.0
    %561 = vmatpush1.msra.mxu0 0.0
    %562 = vmatprep.subr.mxu0 0.0
    %563 = vmatpush1.msra.mxu0 0.0
    %564 = vmatprep.subr.mxu0 0.0
    %565 = vmatpush1.msra.mxu0 0.0
    %566 = vmatprep.subr.mxu0 0.0
    %567 = vmatpush1.msra.mxu0 0.0
    %568 = vmatprep.subr.mxu0 0.0
    %569 = vmatpush1.msra.mxu0 0.0
    %570 = vmatprep.subr.mxu0 0.0
    %571 = vmatpush1.msra.mxu0 0.0
    %572 = vmatprep.subr.mxu0 0.0
    %573 = vmatpush1.msra.mxu0 0.0
    %574 = vmatprep.subr.mxu0 0.0
    %575 = vmatpush1.msra.mxu0 0.0
    %576 = vmatprep.subr.mxu0 0.0
    %577 = vmatpush1.msra.mxu0 0.0
    %578 = vmatprep.subr.mxu0 0.0
    %579 = vmatpush1.msra.mxu0 0.0
    %580 = vmatprep.subr.mxu0 0.0
    %581 = vmatpush1.msra.mxu0 0.0
    %582 = vmatprep.subr.mxu0 0.0
    %583 = vmatpush1.msra.mxu0 0.0
    %584 = vmatprep.subr.mxu0 0.0
    %585 = vmatpush1.msra.mxu0 0.0
    %586 = vmatprep.subr.mxu0 0.0
    %587 = vmatpush1.msra.mxu0 0.0
    %588 = vmatprep.subr.mxu0 0.0
    %589 = vmatpush1.msra.mxu0 0.0
    %590 = vmatprep.subr.mxu0 0.0
    %591 = vmatpush1.msra.mxu0 0.0
    %592 = vmatprep.mubr.f32.mxu0 0.0
    %593 = vmatmul.mubr.f32.gmra.mrb[0].mxu0 %v526
    %v594 = vpop.f32.mrb[0].mxu0
    %v595 = vadd.f32 0.0, %v594
    %v596 = vpop.f32.mrb[0].mxu0
    %597 = vdwg.mxu0
    %v598 = vsel %vm414, %v595, 0.0
    %v599 = vrot.slane %v598, 4
    %v600 = vadd.f32 %v598, %v599
    %v601 = vrot.slane %v600, 2
    %v602 = vadd.f32 %v600, %v601
    %v603 = vrot.slane %v602, 1
    %v604 = vadd.f32 %v602, %v603
    %v605 = vmul.f32 %v604, 0.125
    %v606 = vsub.f32 %v595, %v605
    %v607 = vmul.f32 %v606, %v606
    %v608 = vsel %vm414, %v607, 0.0
    %v609 = vrot.slane %v608, 4
    %v610 = vadd.f32 %v608, %v609
    %v611 = vrot.slane %v610, 2
    %v612 = vadd.f32 %v610, %v611
    %v613 = vrot.slane %v612, 1
    %v614 = vadd.f32 %v612, %v613
    %v615 = vmul.f32 %v614, 0.125
    %v616 = vadd.f32 %v615, 1e-05
    %v617 = vrsqrt.pop %v616
    %v618 = vmul.f32 %v35, %v617
    %v619 = vlaneseq
    %v620 = vshrl.u32 %v619, 7
    %v621 = vsub.s32 0, %v620
    %v622 = vrot.slane %v618, %v621
    %v623 = vmul.f32 %v606, %v622
    %v624 = vlaneseq
    %v625 = vshrl.u32 %v624, 7
    %v626 = vsub.s32 1, %v625
    %v627 = vrot.slane %v35, %v626
    %v628 = vadd.f32 %v623, %v627
    %v629 = vmax.f32 %v628, 0.0
    %v630 = vld [vmem:[%s7] sm:$0x1]
    %632 = vset.pattern.permute.xlu0 0
    %633 = vperm.xlu0 %632, %v35
    %v634 = vpop.permute.xlu0 %633
    %v635 = vrot.slane %v634, 2
    %v638 = vsel %vm414, %v630, 0
    %v641 = vsel %vm414, %v629, 0
    %643 = vmatprep.subr.mxu0 0.0
    %644 = vmatpush1.xpose.msra.mxu0 %v641
    %645 = vmatprep.subr.mxu0 0.0
    %646 = vmatpush1.xpose.msra.mxu0 0.0
    %647 = vmatprep.subr.mxu0 0.0
    %648 = vmatpush1.xpose.msra.mxu0 0.0
    %649 = vmatprep.subr.mxu0 0.0
    %650 = vmatpush1.xpose.msra.mxu0 0.0
    %651 = vmatprep.subr.mxu0 0.0
    %652 = vmatpush1.xpose.msra.mxu0 0.0
    %653 = vmatprep.subr.mxu0 0.0
    %654 = vmatpush1.xpose.msra.mxu0 0.0
    %655 = vmatprep.subr.mxu0 0.0
    %656 = vmatpush1.xpose.msra.mxu0 0.0
    %657 = vmatprep.subr.mxu0 0.0
    %658 = vmatpush1.xpose.msra.mxu0 0.0
    %659 = vmatprep.subr.mxu0 0.0
    %660 = vmatpush1.xpose.msra.mxu0 0.0
    %661 = vmatprep.subr.mxu0 0.0
    %662 = vmatpush1.xpose.msra.mxu0 0.0
    %663 = vmatprep.subr.mxu0 0.0
    %664 = vmatpush1.xpose.msra.mxu0 0.0
    %665 = vmatprep.subr.mxu0 0.0
    %666 = vmatpush1.xpose.msra.mxu0 0.0
    %667 = vmatprep.subr.mxu0 0.0
    %668 = vmatpush1.xpose.msra.mxu0 0.0
    %669 = vmatprep.subr.mxu0 0.0
    %670 = vmatpush1.xpose.msra.mxu0 0.0
    %671 = vmatprep.subr.mxu0 0.0
    %672 = vmatpush1.xpose.msra.mxu0 0.0
    %673 = vmatprep.subr.mxu0 0.0
    %674 = vmatpush1.xpose.msra.mxu0 0.0
    %675 = vmatprep.subr.mxu0 0.0
    %676 = vmatpush1.xpose.msra.mxu0 0.0
    %677 = vmatprep.subr.mxu0 0.0
    %678 = vmatpush1.xpose.msra.mxu0 0.0
    %679 = vmatprep.subr.mxu0 0.0
    %680 = vmatpush1.xpose.msra.mxu0 0.0
    %681 = vmatprep.subr.mxu0 0.0
    %682 = vmatpush1.xpose.msra.mxu0 0.0
    %683 = vmatprep.subr.mxu0 0.0
    %684 = vmatpush1.xpose.msra.mxu0 0.0
    %685 = vmatprep.subr.mxu0 0.0
    %686 = vmatpush1.xpose.msra.mxu0 0.0
    %687 = vmatprep.subr.mxu0 0.0
    %688 = vmatpush1.xpose.msra.mxu0 0.0
    %689 = vmatprep.subr.mxu0 0.0
    %690 = vmatpush1.xpose.msra.mxu0 0.0
    %691 = vmatprep.subr.mxu0 0.0
    %692 = vmatpush1.xpose.msra.mxu0 0.0
    %693 = vmatprep.subr.mxu0 0.0
    %694 = vmatpush1.xpose.msra.mxu0 0.0
    %695 = vmatprep.subr.mxu0 0.0
    %696 = vmatpush1.xpose.msra.mxu0 0.0
    %697 = vmatprep.subr.mxu0 0.0
    %698 = vmatpush1.xpose.msra.mxu0 0.0
    %699 = vmatprep.subr.mxu0 0.0
    %700 = vmatpush1.xpose.msra.mxu0 0.0
    %701 = vmatprep.subr.mxu0 0.0
    %702 = vmatpush1.xpose.msra.mxu0 0.0
    %703 = vmatprep.subr.mxu0 0.0
    %704 = vmatpush1.xpose.msra.mxu0 0.0
    %705 = vmatprep.subr.mxu0 0.0
    %706 = vmatpush1.xpose.msra.mxu0 0.0
    %707 = vmatprep.mubr.f32.mxu0 0.0
    %708 = vmatmul.mubr.f32.gmra.mrb[0].mxu0 %v638
    %v709 = vpop.f32.mrb[0].mxu0
    %v710 = vadd.f32 %v635, %v709
    %v711 = vpop.f32.mrb[0].mxu0
    %712 = vdwg.mxu0
    %vm713 = vcmask 57344
    %714 = vst.msk [vmem:[#allocation2] sm:$0x1] %vm713, %v710
    // Predicated region
    $region38: #{tpu_custom_call.1} parent=1 // pred_check
      _
    $region39: #{tpu_custom_call.1} parent=1 // pred_check_branch
      %716 = sbr.rel (0) target = $region41
    $region40: #{tpu_custom_call.1} parent=1 // pred_region
      %s718 = ssub.s32 16, 16
      %719 = vsyncadd [#allocation3], %s718
      %s721 = sshll.u32 [#allocation2], 4
      %s722 = int_to_ptr.vmem [resolvable:$true] %s721
      %724 = dma.vmem_to_hbm [thread:$0]  %s722, 16, %s9, [#allocation3]
    $region41: #{tpu_custom_call.1} parent=1 // pred_fallthru
      _
    // Predicated region
    $region42: #{tpu_custom_call.1} parent=1 // pred_check
      _
    $region43: #{tpu_custom_call.1} parent=1 // pred_check_branch
      %726 = sbr.rel (0) target = $region45
    $region44: #{tpu_custom_call.1} parent=1 // pred_region
      %727 = dma.done [#allocation3], 16
    $region45: #{tpu_custom_call.1} parent=1 // pred_fallthru
      _
    %728 = vsyncpa [#allocation3], 1

</llo_original>
